<compile_context>
chip_gen: v6e
topology: v6e:2x2x1
jax: 0.10.0
libtpu: 0.0.40
codegen_flags: <defaults>
</compile_context>

<pallas_src>
import functools

import jax
import jax.numpy as jnp
from jax.experimental import pallas as pl
from jax.experimental.pallas import tpu as pltpu


def _round_up(x: int, m: int) -> int:
    return ((x + m - 1) // m) * m


def _vmem_capacity_bytes() -> int:
    """Physical VMEM of the attached TPU (conservative fallback: v7x 64 MiB)."""
    try:
        info = pltpu.get_tpu_info()
        return int(getattr(info, "vmem_capacity_bytes", 64 * 1024 * 1024))
    except Exception:
        return 64 * 1024 * 1024


# -----------------------------------------------------------------------------
# Kernels
# -----------------------------------------------------------------------------
def _mapnet_resident_kernel(x_ref, w1_ref, w2_ref, o_ref):
    """Row tile of out = x + gelu(x @ W1) @ W2 with W1/W2 fully VMEM-resident."""
    x = x_ref[...]
    # MXU matmul (bf16 inputs, f32 accumulate).
    h = jnp.dot(x, w1_ref[...], preferred_element_type=jnp.float32)
    h = jax.nn.gelu(h, approximate=True)          # tanh GELU -> EUP slot (f32)
    # Downcast of the GELU output to the weight dtype is intentional (bf16 MXU).
    delta = jnp.dot(h.astype(w2_ref.dtype), w2_ref[...],
                    preferred_element_type=jnp.float32)
    o_ref[...] = (delta + x.astype(jnp.float32)).astype(o_ref.dtype)


def _mapnet_mtiled_kernel(x_ref, w1_ref, w2_ref, o_ref, acc_ref):
    """Same op with the mid (M) dimension streamed as a reduction grid axis.

    grid = (row_tiles, m_tiles); delta accumulates in a VMEM f32 scratch and the
    residual + store happen on the last m step (P3 pattern).
    """
    m = pl.program_id(1)

    @pl.when(m == 0)
    def _init():
        acc_ref[...] = jnp.zeros_like(acc_ref)

    h = jnp.dot(x_ref[...], w1_ref[...], preferred_element_type=jnp.float32)
    h = jax.nn.gelu(h, approximate=True)          # elementwise -> commutes with M tiling
    acc_ref[...] += jnp.dot(h.astype(w2_ref.dtype), w2_ref[...],
                            preferred_element_type=jnp.float32)

    @pl.when(m == pl.num_programs(1) - 1)
    def _finalize():
        o_ref[...] = (acc_ref[...] + x_ref[...].astype(jnp.float32)
                      ).astype(o_ref.dtype)


# -----------------------------------------------------------------------------
# Wrapper
# -----------------------------------------------------------------------------
@functools.partial(jax.jit, static_argnames=("tm", "m_block", "compute_dtype"))
def mapnet_forward(doc_rep, mask, w1, w2, *, tm=512, m_block=None,
                   compute_dtype=jnp.bfloat16):
    """MapNet.forward(doc_rep, mask) -> doc_rep + MLP(doc_rep).

    doc_rep: (B, S, H)   mask: (B, S) (unused, as in the reference)
    w1: (H, M)  w2: (M, H)
    tm:       row tile (multiple of 8; ideally a multiple of 128/256).
    m_block:  None = auto (resident weights if they fit, else stream M blocks);
              otherwise a multiple of 128 dividing M, or M for fully resident.
    """
    del mask  # unused in the reference forward

    B, S, H = doc_rep.shape
    Hw, M = w1.shape
    assert Hw == H and w2.shape == (M, H), "weight shapes do not match hidden size"

    out_dtype = doc_rep.dtype
    if compute_dtype is not None:
        x = doc_rep.astype(compute_dtype)
        w1 = w1.astype(compute_dtype)
        w2 = w2.astype(compute_dtype)
    else:
        x = doc_rep

    rows = B * S
    x2d = x.reshape(rows, H)

    # Only pad rows up to a multiple of 8 (sublane constraint); the grid itself
    # uses pl.cdiv and Pallas masks the partial last row tile — no full-tensor pad.
    rows_p = _round_up(rows, 8)
    if rows_p != rows:
        x2d = jnp.pad(x2d, ((0, rows_p - rows), (0, 0)))

    tm_eff = min(_round_up(tm, 8), rows_p)
    grid_rows = pl.cdiv(rows_p, tm_eff)

    itemsize = jnp.dtype(x2d.dtype).itemsize
    weight_bytes = 2 * H * M * itemsize          # W1 + W2 in compute dtype

    # Per-chip VMEM budgeting: ~80% of physical, capped at 100 MiB
    # (=> ~51 MiB on v7x, ~100 MiB on v5e/v6e).
    vmem_cap = _vmem_capacity_bytes()
    vmem_limit = min(int(vmem_cap * 0.8), 100 * 1024 * 1024)

    if m_block is None:
        # Keep weights fully resident when (double-buffered) they use at most
        # half the VMEM budget; otherwise stream the mid dimension.
        if 2 * weight_bytes <= vmem_limit // 2 or (M % 128 != 0):
            m_block = M
        else:
            m_block = next(b for b in (512, 384, 256, 128) if M % b == 0)
    assert m_block == M or (M % m_block == 0 and m_block % 128 == 0), (
        "m_block must equal M or be a multiple of 128 dividing M")

    # Advisory cost estimate so XLA can schedule around the custom call.
    cost = pl.CostEstimate(
        flops=4 * rows * H * M,                 # two matmuls
        transcendentals=rows * M,               # tanh GELU
        bytes_accessed=(rows * H * itemsize
                        + rows * H * jnp.dtype(out_dtype).itemsize
                        + weight_bytes),
    )

    if m_block == M:
        # Weight-resident, single grid axis over rows (v5e/v6e sweet spot).
        out2d = pl.pallas_call(
            _mapnet_resident_kernel,
            out_shape=jax.ShapeDtypeStruct((rows_p, H), out_dtype),
            grid_spec=pltpu.PrefetchScalarGridSpec(
                num_scalar_prefetch=0,
                grid=(grid_rows,),
                in_specs=[
                    pl.BlockSpec((tm_eff, H), lambda i: (i, 0)),   # x row tile
                    pl.BlockSpec((H, M), lambda i: (0, 0)),        # W1 (resident)
                    pl.BlockSpec((M, H), lambda i: (0, 0)),        # W2 (resident)
                ],
                out_specs=pl.BlockSpec((tm_eff, H), lambda i: (i, 0)),
            ),
            compiler_params=pltpu.CompilerParams(
                dimension_semantics=("parallel",),
                vmem_limit_bytes=vmem_limit),
            cost_estimate=cost,
        )(x2d, w1, w2)
    else:
        # Streamed mid dimension with a VMEM f32 accumulator (v7x / big H*M).
        grid = (grid_rows, M // m_block)
        out2d = pl.pallas_call(
            _mapnet_mtiled_kernel,
            out_shape=jax.ShapeDtypeStruct((rows_p, H), out_dtype),
            grid_spec=pltpu.PrefetchScalarGridSpec(
                num_scalar_prefetch=0,
                grid=grid,
                in_specs=[
                    pl.BlockSpec((tm_eff, H), lambda i, m: (i, 0)),
                    pl.BlockSpec((H, m_block), lambda i, m: (0, m)),  # W1 col block
                    pl.BlockSpec((m_block, H), lambda i, m: (m, 0)),  # W2 row block
                ],
                out_specs=pl.BlockSpec((tm_eff, H), lambda i, m: (i, 0)),
                scratch_shapes=[pltpu.VMEM((tm_eff, H), jnp.float32)],
            ),
            compiler_params=pltpu.CompilerParams(
                dimension_semantics=("parallel", "arbitrary"),
                vmem_limit_bytes=vmem_limit),
            cost_estimate=cost,
        )(x2d, w1, w2)

    return out2d[:rows].reshape(B, S, H)


# -----------------------------------------------------------------------------
# Reference & test
# -----------------------------------------------------------------------------
def _reference(doc_rep, w1, w2, compute_dtype=None):
    """Pure-JAX reference; compute_dtype mirrors the kernel's bf16 casts."""
    x = doc_rep
    if compute_dtype is not None:
        x = x.astype(compute_dtype)
        w1 = w1.astype(compute_dtype)
        w2 = w2.astype(compute_dtype)
    h = jnp.dot(x, w1, preferred_element_type=jnp.float32)
    h = jax.nn.gelu(h, approximate=True)
    delta = jnp.dot(h.astype(w2.dtype), w2, preferred_element_type=jnp.float32)
    return (delta + x.astype(jnp.float32)).astype(doc_rep.dtype)


if __name__ == "__main__":
    # Small shapes consistent with the module: batch=2, seq=8, hidden=32, mid=2*hidden.
    B, S, H = 2, 8, 32
    MID_RATIO = 2
    M = int(H * MID_RATIO)

    key = jax.random.PRNGKey(0)
    k_x, k_w1, k_w2, k_x2, k_w3, k_w4 = jax.random.split(key, 6)

    doc_rep = jax.random.normal(k_x, (B, S, H), dtype=jnp.float32)
    mask = jnp.ones((B, S), dtype=jnp.float32)
    # Deterministic parameter init, matching init_std=0.02 (no bias).
    w1 = (0.02 * jax.random.normal(k_w1, (H, M))).astype(jnp.float32)
    w2 = (0.02 * jax.random.normal(k_w2, (M, H))).astype(jnp.float32)

    # Path 1: weight-resident kernel.
    out = mapnet_forward(doc_rep, mask, w1, w2)
    out = jax.block_until_ready(out)
    assert out.shape == (B, S, H)

    ref_bf16 = _reference(doc_rep, w1, w2, compute_dtype=jnp.bfloat16)
    assert jnp.allclose(out, ref_bf16, atol=2e-3, rtol=2e-3), \
        "mismatch vs bf16-consistent reference"
    ref_f32 = _reference(doc_rep, w1, w2, compute_dtype=None)
    assert jnp.allclose(out, ref_f32, atol=5e-2, rtol=5e-2), \
        "mismatch vs exact f32 reference (beyond bf16-cast tolerance)"

    # Path 2: exercise the M-streamed accumulator kernel (the v7x / large-H*M
    # configuration) on a still-small lane-dense shape: hidden=128, mid=2*128,
    # forced to two 128-wide mid blocks.
    H2 = 128
    M2 = int(H2 * MID_RATIO)
    doc_rep2 = jax.random.normal(k_x2, (B, S, H2), dtype=jnp.float32)
    w1b = (0.02 * jax.random.normal(k_w3, (H2, M2))).astype(jnp.float32)
    w2b = (0.02 * jax.random.normal(k_w4, (M2, H2))).astype(jnp.float32)

    out2 = mapnet_forward(doc_rep2, mask, w1b, w2b, m_block=128)
    out2 = jax.block_until_ready(out2)
    assert out2.shape == (B, S, H2)
    ref2 = _reference(doc_rep2, w1b, w2b, compute_dtype=jnp.bfloat16)
    assert jnp.allclose(out2, ref2, atol=2e-3, rtol=2e-3), \
        "mismatch vs reference on M-streamed path"

    print("KERNEL_OK")
</pallas_src>

<mosaic_0001>
module attributes {stable_mosaic.version = 11 : i64} {
  func.func @_mapnet_resident_kernel(%arg0: i32, %arg1: memref<16x32xbf16, #tpu.memory_space<vmem>>, %arg2: memref<32x64xbf16, #tpu.memory_space<vmem>>, %arg3: memref<64x32xbf16, #tpu.memory_space<vmem>>, %arg4: memref<16x32xf32, #tpu.memory_space<vmem>>) attributes {dimension_semantics = [#tpu.dimension_semantics<parallel>], iteration_bounds = array<i64: 1>, scalar_prefetch = 0 : i64, scratch_operands = 0 : i64, tpu.core_type = #tpu.core_type<tc>, window_params = [{transform_indices = @transform_0, window_bounds = array<i64: 16, 32>}, {pipeline_mode = #tpu.pipeline_mode<synchronous>, transform_indices = @transform_1, window_bounds = array<i64: 32, 64>}, {pipeline_mode = #tpu.pipeline_mode<synchronous>, transform_indices = @transform_2, window_bounds = array<i64: 64, 32>}, {transform_indices = @transform_3, window_bounds = array<i64: 16, 32>}]} {
    %c0 = arith.constant 0 : index
    %c0_0 = arith.constant 0 : index
    %0 = vector.load %arg1[%c0, %c0_0] : memref<16x32xbf16, #tpu.memory_space<vmem>>, vector<16x32xbf16>
    %c0_1 = arith.constant 0 : index
    %c0_2 = arith.constant 0 : index
    %1 = vector.load %arg2[%c0_1, %c0_2] : memref<32x64xbf16, #tpu.memory_space<vmem>>, vector<32x64xbf16>
    %cst = arith.constant dense<0.000000e+00> : vector<16x64xf32>
    %2 = tpu.matmul %0, %1, %cst {dimension_numbers = #tpu.dot_dimension_numbers<[1], [0], [0], [1], [0, 0, 1, 1], [], []>} : vector<16x32xbf16>, vector<32x64xbf16>, vector<16x64xf32> -> vector<16x64xf32>
    %3 = arith.mulf %2, %2 : vector<16x64xf32>
    %4 = arith.mulf %2, %3 : vector<16x64xf32>
    %cst_3 = arith.constant 4.471500e-02 : f32
    %5 = vector.broadcast %cst_3 : f32 to vector<16x64xf32>
    %6 = arith.mulf %5, %4 : vector<16x64xf32>
    %7 = arith.addf %2, %6 : vector<16x64xf32>
    %cst_4 = arith.constant 0.797884583 : f32
    %8 = vector.broadcast %cst_4 : f32 to vector<16x64xf32>
    %9 = arith.mulf %8, %7 : vector<16x64xf32>
    %10 = math.tanh %9 : vector<16x64xf32>
    %cst_5 = arith.constant 1.000000e+00 : f32
    %11 = vector.broadcast %cst_5 : f32 to vector<16x64xf32>
    %12 = arith.addf %11, %10 : vector<16x64xf32>
    %cst_6 = arith.constant 5.000000e-01 : f32
    %13 = vector.broadcast %cst_6 : f32 to vector<16x64xf32>
    %14 = arith.mulf %13, %12 : vector<16x64xf32>
    %15 = arith.mulf %2, %14 : vector<16x64xf32>
    %16 = arith.truncf %15 : vector<16x64xf32> to vector<16x64xbf16>
    %c0_7 = arith.constant 0 : index
    %c0_8 = arith.constant 0 : index
    %17 = vector.load %arg3[%c0_7, %c0_8] : memref<64x32xbf16, #tpu.memory_space<vmem>>, vector<64x32xbf16>
    %cst_9 = arith.constant dense<0.000000e+00> : vector<16x32xf32>
    %18 = tpu.matmul %16, %17, %cst_9 {dimension_numbers = #tpu.dot_dimension_numbers<[1], [0], [0], [1], [0, 0, 1, 1], [], []>} : vector<16x64xbf16>, vector<64x32xbf16>, vector<16x32xf32> -> vector<16x32xf32>
    %19 = arith.extf %0 : vector<16x32xbf16> to vector<16x32xf32>
    %20 = arith.addf %18, %19 : vector<16x32xf32>
    %c0_10 = arith.constant 0 : index
    %c0_11 = arith.constant 0 : index
    %21 = vector.load %arg4[%c0_10, %c0_11] : memref<16x32xf32, #tpu.memory_space<vmem>>, vector<16x32xf32>
    tpu.vector_store %arg4[%c0_10, %c0_11], %20 {strides = array<i32>} : memref<16x32xf32, #tpu.memory_space<vmem>>, vector<16x32xf32>,
    return
  }
  func.func @transform_0(%arg0: i32) -> (i32, i32) {
    %c0_i32 = arith.constant 0 : i32
    %c0_i32_0 = arith.constant 0 : i32
    return %arg0, %c0_i32 : i32, i32
  }
  func.func @transform_1(%arg0: i32) -> (i32, i32) {
    %c0_i32 = arith.constant 0 : i32
    %c0_i32_0 = arith.constant 0 : i32
    %c0_i32_1 = arith.constant 0 : i32
    return %c0_i32, %c0_i32_0 : i32, i32
  }
  func.func @transform_2(%arg0: i32) -> (i32, i32) {
    %c0_i32 = arith.constant 0 : i32
    %c0_i32_0 = arith.constant 0 : i32
    %c0_i32_1 = arith.constant 0 : i32
    return %c0_i32, %c0_i32_0 : i32, i32
  }
  func.func @transform_3(%arg0: i32) -> (i32, i32) {
    %c0_i32 = arith.constant 0 : i32
    %c0_i32_0 = arith.constant 0 : i32
    return %arg0, %c0_i32 : i32, i32
  }
}

</mosaic_0001>

<llo_original>
// kernel: mapnet_forward.1
$region0: #{mapnet_forward.1}
  #allocation0 [shape = 'u32[]', space=smem, size = 0x4, offset = 0x4, fixed_abs, tag = 'smem constant byte address 0x4 - core index']
  #allocation1 [shape = 'u32[144,128]{1,0:T(1,128)}', space=vmem, size = 0x12000, scoped, tag = 'internal scratch']
  %s0 = inlined_call_operand.vmem [shape: bf16[16,32], index: 0, kind: input, shape index: {}]
  %s1 = inlined_call_operand.vmem [shape: bf16[32,64], index: 1, kind: input, shape index: {}]
  %s2 = inlined_call_operand.vmem [shape: bf16[64,32], index: 2, kind: input, shape index: {}]
  %s3 = inlined_call_operand.hbm [shape: f32[16,32], index: 3, kind: output, shape index: {}]
  %s4 = sld [smem:[#allocation0]]
  $region22: #{mapnet_forward.1} parent=0
    _
  %s6 = ssub.s32 1, %s4
  %s7 = scalar_select 0, %s6, %s4
  $region1: #{mapnet_forward.1} parent=0
    #allocation2 [shape = 'u8[8192]{0}', space=vmem, size = 0x2000, scoped, tag = 'output window, operand 0, single buffered']
    #allocation3 [shape = 's32[1]{0}', space=sflag, size = 0x4, scoped, tag = 'scoped memory for mapnet_forward.1']
    %8 = vsyncpa [#allocation3], 0
    // Predicated region
    $region2: #{mapnet_forward.1} parent=1 // pred_check
      _
    $region3: #{mapnet_forward.1} parent=1 // pred_check_branch
      %10 = sbr.rel (0) target = $region5
    $region4: #{mapnet_forward.1} parent=1 // pred_region
      _
    $region5: #{mapnet_forward.1} parent=1 // pred_fallthru
      _
    // Predicated region
    $region6: #{mapnet_forward.1} parent=1 // pred_check
      _
    $region7: #{mapnet_forward.1} parent=1 // pred_check_branch
      %12 = sbr.rel (0) target = $region9
    $region8: #{mapnet_forward.1} parent=1 // pred_region
      _
    $region9: #{mapnet_forward.1} parent=1 // pred_fallthru
      _
    // Predicated region
    $region10: #{mapnet_forward.1} parent=1 // pred_check
      _
    $region11: #{mapnet_forward.1} parent=1 // pred_check_branch
      %14 = sbr.rel (0) target = $region13
    $region12: #{mapnet_forward.1} parent=1 // pred_region
      _
    $region13: #{mapnet_forward.1} parent=1 // pred_fallthru
      _
    %v16 = vld [vmem:[%s0] sm:$0xf]
    %v17 = vld [vmem:[%s0 + $0x4] sm:$0xf]
    %v18 = vld [vmem:[%s1] sm:$0xf]
    %v19 = vld [vmem:[%s1 + $0x4] sm:$0xf]
    %v20 = vld [vmem:[%s1 + $0x8] sm:$0xf]
    %v21 = vld [vmem:[%s1 + $0xc] sm:$0xf]
    %v24 = vunpack.c.l.b16 %v16
    %v25 = vunpack.c.l.b16 %v17
    %v26 = vpack.c.b16 %v25, %v24
    %v31 = vunpack.c.l.b16 %v18
    %v32 = vunpack.c.l.b16 %v19
    %v33 = vunpack.c.l.b16 %v20
    %v34 = vunpack.c.l.b16 %v21
    %v35 = vpack.c.b16 %v32, %v31
    %v36 = vpack.c.b16 %v34, %v33
    %vm39 = vcmask 261120
    %v41 = vsel %vm39, %v26, 0
    %43 = vmatprep.subr.bf16.mxu0 0
    %44 = vmatpush1.bf16.msra.mxu0 0
    %45 = vmatprep.subr.bf16.mxu0 0
    %46 = vmatpush1.bf16.msra.mxu0 0
    %47 = vmatprep.subr.bf16.mxu0 0
    %48 = vmatpush1.bf16.msra.mxu0 0
    %49 = vmatprep.subr.bf16.mxu0 0
    %50 = vmatpush1.bf16.msra.mxu0 0
    %51 = vmatprep.subr.bf16.mxu0 0
    %52 = vmatpush1.bf16.msra.mxu0 0
    %53 = vmatprep.subr.bf16.mxu0 0
    %54 = vmatpush1.bf16.msra.mxu0 0
    %55 = vmatprep.subr.bf16.mxu0 0
    %56 = vmatpush1.bf16.msra.mxu0 %v36
    %57 = vmatprep.subr.bf16.mxu0 0
    %58 = vmatpush1.bf16.msra.mxu0 %v35
    %59 = vmatprep.subr.bf16.mxu0 0
    %60 = vmatpush2.bf16.msra.mxu0 0
    %61 = vmatprep.subr.bf16.mxu0 0
    %62 = vmatpush2.bf16.msra.mxu0 0
    %63 = vmatprep.subr.bf16.mxu0 0
    %64 = vmatpush2.bf16.msra.mxu0 0
    %65 = vmatprep.subr.bf16.mxu0 0
    %66 = vmatpush2.bf16.msra.mxu0 0
    %67 = vmatprep.subr.bf16.mxu0 0
    %68 = vmatpush2.bf16.msra.mxu0 0
    %69 = vmatprep.subr.bf16.mxu0 0
    %70 = vmatpush2.bf16.msra.mxu0 0
    %71 = vmatprep.subr.bf16.mxu0 0
    %72 = vmatpush2.bf16.msra.mxu0 0
    %73 = vmatprep.subr.bf16.mxu0 0
    %74 = vmatpush2.bf16.msra.mxu0 0
    %75 = vmatprep.mubr.bf16.mxu0 0
    %76 = vmatmul.mubr.bf16.gmra.mxu0 %v41
    %v77 = vpop.f32.mrf.mxu0
    %v78 = vadd.f32 0.0, %v77
    %v79 = vpop.f32.mrf.mxu0
    %v80 = vpop.f32.mrf.mxu0
    %v81 = vadd.f32 0.0, %v80
    %v82 = vpop.f32.mrf.mxu0
    %83 = vdwg.mxu0
    %v84 = vmul.f32 %v78, %v78
    %v85 = vmul.f32 %v81, %v81
    %v86 = vmul.f32 %v78, %v84
    %v87 = vmul.f32 %v81, %v85
    %v88 = vmul.f32 %v86, 0.044715
    %v89 = vmul.f32 %v87, 0.044715
    %v90 = vadd.f32 %v78, %v88
    %v91 = vadd.f32 %v81, %v89
    %v92 = vmul.f32 %v90, 0.7978846
    %v93 = vmul.f32 %v91, 0.7978846
    %v94 = vtanh.pop %v92
    %v95 = vtanh.pop %v93
    %v96 = vadd.f32 %v94, 1.0
    %v97 = vadd.f32 %v95, 1.0
    %v98 = vmul.f32 %v96, 0.5
    %v99 = vmul.f32 %v97, 0.5
    %v100 = vmul.f32 %v78, %v98
    %v101 = vmul.f32 %v81, %v99
    %v102 = vpack.c.bf16 %v101, %v100
    %v103 = vld [vmem:[%s2] sm:$0xf]
    %v104 = vld [vmem:[%s2 + $0x4] sm:$0xf]
    %v105 = vld [vmem:[%s2 + $0x8] sm:$0xf]
    %v106 = vld [vmem:[%s2 + $0xc] sm:$0xf]
    %v107 = vld [vmem:[%s2 + $0x10] sm:$0xf]
    %v108 = vld [vmem:[%s2 + $0x14] sm:$0xf]
    %v109 = vld [vmem:[%s2 + $0x18] sm:$0xf]
    %v110 = vld [vmem:[%s2 + $0x1c] sm:$0xf]
    %v111 = vunpack.c.l.bf16 %v16
    %v112 = vunpack.c.l.bf16 %v17
    %v121 = vunpack.c.l.b16 %v103
    %v122 = vunpack.c.l.b16 %v104
    %v123 = vunpack.c.l.b16 %v105
    %v124 = vunpack.c.l.b16 %v106
    %v125 = vunpack.c.l.b16 %v107
    %v126 = vunpack.c.l.b16 %v108
    %v127 = vunpack.c.l.b16 %v109
    %v128 = vunpack.c.l.b16 %v110
    %v129 = vpack.c.b16 %v122, %v121
    %v130 = vpack.c.b16 %v124, %v123
    %v131 = vpack.c.b16 %v126, %v125
    %v132 = vpack.c.b16 %v128, %v127
    %vm137 = vcmask 523264
    %v139 = vsel %vm137, %v102, 0
    %141 = vmatprep.subr.bf16.mxu0 0
    %142 = vmatpush1.bf16.msra.mxu0 0
    %143 = vmatprep.subr.bf16.mxu0 0
    %144 = vmatpush1.bf16.msra.mxu0 0
    %145 = vmatprep.subr.bf16.mxu0 0
    %146 = vmatpush1.bf16.msra.mxu0 0
    %147 = vmatprep.subr.bf16.mxu0 0
    %148 = vmatpush1.bf16.msra.mxu0 0
    %149 = vmatprep.subr.bf16.mxu0 0
    %150 = vmatpush1.bf16.msra.mxu0 %v132
    %151 = vmatprep.subr.bf16.mxu0 0
    %152 = vmatpush1.bf16.msra.mxu0 %v131
    %153 = vmatprep.subr.bf16.mxu0 0
    %154 = vmatpush1.bf16.msra.mxu0 %v130
    %155 = vmatprep.subr.bf16.mxu0 0
    %156 = vmatpush1.bf16.msra.mxu0 %v129
    %157 = vmatprep.subr.bf16.mxu0 0
    %158 = vmatpush2.bf16.msra.mxu0 0
    %159 = vmatprep.subr.bf16.mxu0 0
    %160 = vmatpush2.bf16.msra.mxu0 0
    %161 = vmatprep.subr.bf16.mxu0 0
    %162 = vmatpush2.bf16.msra.mxu0 0
    %163 = vmatprep.subr.bf16.mxu0 0
    %164 = vmatpush2.bf16.msra.mxu0 0
    %165 = vmatprep.subr.bf16.mxu0 0
    %166 = vmatpush2.bf16.msra.mxu0 0
    %167 = vmatprep.subr.bf16.mxu0 0
    %168 = vmatpush2.bf16.msra.mxu0 0
    %169 = vmatprep.subr.bf16.mxu0 0
    %170 = vmatpush2.bf16.msra.mxu0 0
    %171 = vmatprep.subr.bf16.mxu0 0
    %172 = vmatpush2.bf16.msra.mxu0 0
    %173 = vmatprep.mubr.bf16.mxu0 0
    %174 = vmatmul.mubr.bf16.gmra.mxu0 %v139
    %v175 = vpop.f32.mrf.mxu0
    %v176 = vadd.f32 %v111, %v175
    %v177 = vpop.f32.mrf.mxu0
    %v178 = vpop.f32.mrf.mxu0
    %v179 = vadd.f32 %v112, %v178
    %v180 = vpop.f32.mrf.mxu0
    %181 = vdwg.mxu0
    %182 = vst.msk [vmem:[#allocation2] sm:$0xff] %vm39, %v176
    %183 = vst.msk [vmem:[#allocation2 + $0x8] sm:$0xff] %vm39, %v179
    // Predicated region
    $region14: #{mapnet_forward.1} parent=1 // pred_check
      _
    $region15: #{mapnet_forward.1} parent=1 // pred_check_branch
      %185 = sbr.rel (0) target = $region17
    $region16: #{mapnet_forward.1} parent=1 // pred_region
      %s187 = ssub.s32 256, 256
      %188 = vsyncadd [#allocation3], %s187
      %s189 = sshll.u32 [#allocation2], 4
      %s190 = int_to_ptr.vmem [resolvable:$true] %s189
      %195 = dma.vmem_to_hbm [thread:$0]  %s190, 256, %s3, [#allocation3], 128, 128, 8
    $region17: #{mapnet_forward.1} parent=1 // pred_fallthru
      _
    // Predicated region
    $region18: #{mapnet_forward.1} parent=1 // pred_check
      _
    $region19: #{mapnet_forward.1} parent=1 // pred_check_branch
      %197 = sbr.rel (0) target = $region21
    $region20: #{mapnet_forward.1} parent=1 // pred_region
      %198 = dma.done [#allocation3], 256
    $region21: #{mapnet_forward.1} parent=1 // pred_fallthru
      _
    %199 = vsyncpa [#allocation3], 1

</llo_original>
